<compile_context>
chip_gen: v7x
topology: tpu7x:2x2x1
jax: 0.10.0
libtpu: 0.0.40
codegen_flags: <defaults>
</compile_context>

<pallas_src>
import math

import jax
import jax.numpy as jnp
from jax.experimental import pallas as pl
from jax.experimental.pallas import tpu as pltpu


# ----------------------------------------------------------------------------
# Helpers
# ----------------------------------------------------------------------------
def _round_up(x, m):
    return ((x + m - 1) // m) * m


def _vmem_budget():
    """Device-aware VMEM budgeting: (tile-selection budget, vmem_limit_bytes)."""
    default_cap = 64 * 1024 * 1024
    try:
        info = pltpu.get_tpu_info()
        cap = int(getattr(info, "vmem_capacity_bytes", default_cap) or default_cap)
    except Exception:                       # query unavailable -> be conservative
        cap = default_cap
    vmem_limit = cap // 2                   # leave headroom for Mosaic internals
    budget = (vmem_limit * 3) // 4          # tile-selection target below the limit
    return budget, vmem_limit


def _pick_row_tile(tb, batch, hidden, c_pad, in_isz, out_isz, budget):
    """Choose the row-tile size tm for the flattened (T*B, H) slab.

    Preference order (to avoid wrapper-side pads / slices of the big slabs):
      1. tm divides T*B exactly and is a multiple of lcm(B, 8)   -> no padding
      2. a single full-extent tile tm == T*B                      -> no padding
      3. fallback: pad the row dim (only for awkward T*B values)

    Returns (tm, padded_rows).
    """
    unit = (batch * 8) // math.gcd(batch, 8)              # lcm(batch, 8)
    cap_rows = 4096                                        # diminishing returns past ~1-2k

    def footprint(t):
        return (2 * hidden * c_pad * 2                     # resident Wn bf16 (dbl-buffered)
                + 2 * 2 * t * hidden * in_isz              # x1, x2 (double-buffered)
                + 2 * batch * t * 4                        # selector (double-buffered)
                + 2 * t * c_pad * out_isz                  # logits tile (double-buffered)
                + 2 * batch * hidden * 4)                  # per-tile mean partial

    if tb % unit == 0:
        q = tb // unit
        best = unit
        for d in range(1, q + 1):
            if q % d:
                continue
            t = unit * d
            if t <= cap_rows and t > best and footprint(t) <= budget:
                best = t
        return best, 0

    # T*B is not a multiple of lcm(B, 8): a single full-extent tile needs no
    # (8,128) alignment because the block equals the full array dims.
    if footprint(tb) <= budget:
        return tb, 0

    # Last resort: pad the row dim (padded rows are zero => mean stays exact).
    tm = min(_round_up(512, unit), cap_rows)
    while tm > unit and footprint(tm) > budget:
        tm = max(unit, _round_up(tm // 2, unit))
    return tm, _round_up(tb, tm) - tb


# ----------------------------------------------------------------------------
# Kernels
# ----------------------------------------------------------------------------
def _classifier_mean_kernel(wts_ref, x1_ref, x2_ref, sel_ref, wn_ref,
                            logits_ref, psum_ref):
    """Streams one row tile of seq/cross features (fully parallel grid step):
       - shared NormLinear on the fused activation (bf16 MXU, f32 accumulate)
       - per-batch partial sum of seq_feat rows for the fused mean-over-time,
         via a tiny hoisted 0/1 selector matmul (exact f32)."""
    x1 = x1_ref[...].astype(jnp.float32)                 # (tm, H) seq rows
    x2 = x2_ref[...].astype(jnp.float32)                 # (tm, H) cross rows

    # weights[0]*x1@Wn + weights[1]*x2@Wn == (w0*x1 + w1*x2) @ Wn (shared Wn).
    # Elementwise fuse stays f32 (v5e VPU has no bf16); cast only for the MXU.
    x = wts_ref[0] * x1 + wts_ref[1] * x2                 # (tm, H) f32
    logits_ref[...] = jnp.dot(
        x.astype(wn_ref.dtype), wn_ref[...],
        preferred_element_type=jnp.float32).astype(logits_ref.dtype)

    # Fused mean-over-time partial: rows of the flattened (T*B, H) slab are
    # t*B + b and tm % B == 0, so the precomputed (B, tm) selector yields the
    # per-batch partial sums of this tile (exact f32 accumulation).  Emitting
    # it as an independent per-tile output keeps the grid axis parallel.
    psum_ref[...] = jnp.dot(sel_ref[...], x1, preferred_element_type=jnp.float32)


def _clip_logits_kernel(scale_ref, img_ref, txt_ref, li_ref):
    """CLIP logits_per_image: eps-safe row normalization (rsqrt on the EUP),
    single MXU similarity matmul contracting the feature dim (no transposes)."""
    img = img_ref[...]                                    # (B, H)
    txt = txt_ref[...]                                    # (B, H)
    inv_i = jax.lax.rsqrt(jnp.maximum(
        jnp.sum(img * img, axis=-1, keepdims=True), 1e-24))
    inv_t = jax.lax.rsqrt(jnp.maximum(
        jnp.sum(txt * txt, axis=-1, keepdims=True), 1e-24))
    scale = jnp.exp(scale_ref[0])
    sim = jax.lax.dot_general(img * inv_i, txt * inv_t,
                              (((1,), (1,)), ((), ())),
                              preferred_element_type=jnp.float32)
    li_ref[...] = scale * sim


# ----------------------------------------------------------------------------
# Wrappers
# ----------------------------------------------------------------------------
def classifier_and_mean(weights2, seq_feat, cross_feat, W, *,
                        weight_dtype=jnp.bfloat16, logits_dtype=jnp.float32):
    """Tiled, fused classifier + mean-over-time (single streaming HBM pass).

    Returns (sequence_logits (T, B, C) logits_dtype, visual_cls (B, H) f32)."""
    T, B, H = seq_feat.shape
    C = W.shape[1]
    TB = T * B

    # Hoisted NormLinear column-normalization (F.normalize(W, dim=0)); done once
    # in XLA instead of per grid step inside the kernel.
    col_norm = jnp.sqrt(jnp.sum(W.astype(jnp.float32) ** 2, axis=0, keepdims=True))
    Wn = W / jnp.maximum(col_norm, 1e-12)

    # Lane-dense class dim (multiple of 128 -> unmasked logits stores); skip the
    # pad entirely when C is already lane-aligned so the output reshape is free.
    # (128 granularity kept on purpose: the kernel is HBM-bound, so padding the
    #  logits writeback further to 256 would cost more than the MXU-fill gain.)
    Cp = C if C % 128 == 0 else _round_up(C, 128)
    if Cp != C:
        Wn = jnp.pad(Wn, ((0, 0), (0, Cp - C)))
    Wn = Wn.astype(weight_dtype)            # resident bf16 weight: half the VMEM

    in_isz = jnp.dtype(seq_feat.dtype).itemsize
    out_isz = jnp.dtype(logits_dtype).itemsize
    budget, vmem_limit = _vmem_budget()
    tm, padded_rows = _pick_row_tile(TB, B, H, Cp, in_isz, out_isz, budget)

    x1 = seq_feat.reshape(TB, H)
    x2 = cross_feat.reshape(TB, H)
    TBp = TB + padded_rows
    if padded_rows:
        # Rare fallback only for awkward T*B values; padded rows are zero, so
        # the fused mean stays exact.
        x1 = jnp.pad(x1, ((0, padded_rows), (0, 0)))
        x2 = jnp.pad(x2, ((0, padded_rows), (0, 0)))
    n_tiles = TBp // tm

    # Hoisted batch selector (constant across grid steps, resident in VMEM):
    # sel[b, r] = 1 iff local row r belongs to batch b (valid because tm % B == 0).
    sel = (jnp.arange(tm, dtype=jnp.int32)[None, :] % B
           == jnp.arange(B, dtype=jnp.int32)[:, None]).astype(jnp.float32)

    cost = pl.CostEstimate(
        flops=2 * TBp * H * Cp + 2 * TBp * H * B + 3 * TBp * H,
        transcendentals=0,
        bytes_accessed=(2 * TBp * H * in_isz           # x1 + x2 reads
                        + H * Cp * jnp.dtype(weight_dtype).itemsize
                        + B * tm * 4                   # selector (resident)
                        + TBp * Cp * out_isz           # logits writeback
                        + n_tiles * B * H * 4),        # mean partials
    )

    logits, psums = pl.pallas_call(
        _classifier_mean_kernel,
        out_shape=(jax.ShapeDtypeStruct((TBp, Cp), logits_dtype),
                   jax.ShapeDtypeStruct((n_tiles, B, H), jnp.float32)),
        grid_spec=pltpu.PrefetchScalarGridSpec(
            num_scalar_prefetch=0,
            grid=(n_tiles,),
            in_specs=[
                pl.BlockSpec(memory_space=pltpu.MemorySpace.SMEM),  # weights (2,)
                pl.BlockSpec((tm, H), lambda i: (i, 0)),            # seq rows
                pl.BlockSpec((tm, H), lambda i: (i, 0)),            # cross rows
                pl.BlockSpec((B, tm), lambda i: (0, 0)),            # resident selector
                pl.BlockSpec((H, Cp), lambda i: (0, 0)),            # resident Wn
            ],
            out_specs=(
                pl.BlockSpec((tm, Cp), lambda i: (i, 0)),           # logits tile
                pl.BlockSpec((None, B, H), lambda i: (i, 0, 0)),    # mean partial
            ),
        ),
        compiler_params=pltpu.CompilerParams(
            # No grid-carried state -> row axis is parallel (megacore on v7x).
            dimension_semantics=("parallel",),
            vmem_limit_bytes=vmem_limit,
        ),
        cost_estimate=cost,
    )(weights2, x1, x2, sel, Wn)

    # Tiny epilogue: reduce the (n_tiles, B, H) partials and scale by 1/T.
    visual_cls = jnp.sum(psums, axis=0) * (1.0 / T)

    if padded_rows:
        logits = logits[:TB]
    if Cp != C:
        logits = logits[:, :C]
    sequence_logits = logits.reshape(T, B, C)
    return sequence_logits, visual_cls


def clip_logits(logit_scale, img, txt):
    B = img.shape[0]
    li = pl.pallas_call(
        _clip_logits_kernel,
        out_shape=jax.ShapeDtypeStruct((B, B), jnp.float32),
        in_specs=[pl.BlockSpec(memory_space=pltpu.MemorySpace.SMEM),
                  pl.BlockSpec(memory_space=pltpu.MemorySpace.VMEM),
                  pl.BlockSpec(memory_space=pltpu.MemorySpace.VMEM)],
        out_specs=pl.BlockSpec(memory_space=pltpu.MemorySpace.VMEM),
    )(logit_scale, img, txt)
    # logits_per_text == logits_per_image.T exactly; tiny XLA transpose instead
    # of a second MXU matmul.
    return li, li.T


# ----------------------------------------------------------------------------
# Parameter init (deterministic, matches SLRModel.__init__ shapes/semantics)
# ----------------------------------------------------------------------------
def init_params(key, hidden_size, num_classes):
    # NormLinear: xavier_uniform_(weight (H, C), gain=calculate_gain('relu'))
    gain = math.sqrt(2.0)
    bound = gain * math.sqrt(6.0 / (hidden_size + num_classes))
    classifier_w = jax.random.uniform(
        key, (hidden_size, num_classes), jnp.float32, minval=-bound, maxval=bound)
    return {
        "classifier_w": classifier_w,
        "weights": jnp.array([0.5, 0.5], jnp.float32),          # torch.ones(2)/2
        "logit_scale": jnp.array([math.log(1.0 / 0.07)], jnp.float32),
    }


# ----------------------------------------------------------------------------
# Forward (the Pallas-backed portion of SLRModel.forward)
# ----------------------------------------------------------------------------
def slr_head_forward(params, seq_feat, cross_feat, gloss_cls):
    """
    seq_feat   : (T, B, H) — stands in for tm_outputs['predictions']
    cross_feat : (T, B, H) — stands in for the cross-attention `predictions`
    gloss_cls  : (B, H)    — stands in for t2v(glossEmbedder(...)) output
    (bf16 feature inputs are accepted; the fuse is done in f32 in-kernel.)
    """
    # Fused: sequence_logits (shared NormLinear on both branches) and
    # visual_cls = predictions.mean(dim=0) computed in one streaming pass.
    sequence_logits, visual_cls = classifier_and_mean(
        params["weights"], seq_feat, cross_feat, params["classifier_w"])
    # TODO(synk): v2t / t2v MLP heads are undefined externals; features used directly.

    logits_per_image, logits_per_text = clip_logits(
        params["logit_scale"], visual_cls, gloss_cls)

    return {
        "visual_cls": visual_cls,
        "gloss_cls": gloss_cls,
        "visual_vec": logits_per_image,
        "gloss_vec": logits_per_text,
        "seq_feat": seq_feat,
        "sequence_logits": sequence_logits,
    }


# ----------------------------------------------------------------------------
if __name__ == "__main__":
    T, B, H, C = 8, 2, 32, 16   # seq len, batch, hidden_size, num_classes

    key = jax.random.PRNGKey(0)
    k_param, k_seq, k_cross, k_gloss = jax.random.split(key, 4)

    params = init_params(k_param, H, C)
    seq_feat = jax.random.normal(k_seq, (T, B, H), jnp.float32)
    cross_feat = jax.random.normal(k_cross, (T, B, H), jnp.float32)
    gloss_cls = jax.random.normal(k_gloss, (B, H), jnp.float32)

    out = slr_head_forward(params, seq_feat, cross_feat, gloss_cls)
    jax.block_until_ready(out)

    # Shape / finiteness checks
    assert out["sequence_logits"].shape == (T, B, C)
    assert out["visual_cls"].shape == (B, H)
    assert out["visual_vec"].shape == (B, B)
    assert out["gloss_vec"].shape == (B, B)
    assert bool(jnp.all(jnp.isfinite(out["sequence_logits"])))
    assert bool(jnp.all(jnp.isfinite(out["visual_vec"])))
    assert bool(jnp.all(jnp.isfinite(out["gloss_vec"])))

    # Numerical checks against a pure-JAX reference
    Wn_ref = params["classifier_w"] / jnp.maximum(
        jnp.sqrt(jnp.sum(params["classifier_w"] ** 2, axis=0, keepdims=True)), 1e-12)
    ref_logits = (params["weights"][0] * seq_feat
                  + params["weights"][1] * cross_feat) @ Wn_ref
    assert bool(jnp.allclose(out["sequence_logits"], ref_logits,
                             atol=5e-2, rtol=5e-2))        # bf16 MXU tolerance
    ref_mean = seq_feat.mean(axis=0)
    assert bool(jnp.allclose(out["visual_cls"], ref_mean, atol=1e-3, rtol=1e-3))
    ref_img = ref_mean / jnp.linalg.norm(ref_mean, axis=-1, keepdims=True)
    ref_txt = gloss_cls / jnp.linalg.norm(gloss_cls, axis=-1, keepdims=True)
    ref_li = jnp.exp(params["logit_scale"][0]) * (ref_img @ ref_txt.T)
    assert bool(jnp.allclose(out["visual_vec"], ref_li, atol=1e-2, rtol=1e-2))
    assert bool(jnp.allclose(out["gloss_vec"], out["visual_vec"].T,
                             atol=1e-5, rtol=1e-5))

    print("KERNEL_OK")
</pallas_src>

<mosaic_0001>
module attributes {stable_mosaic.version = 11 : i64} {
  func.func @_classifier_mean_kernel(%arg0: i32, %arg1: memref<2xf32, #tpu.memory_space<smem>>, %arg2: memref<16x32xf32, #tpu.memory_space<vmem>>, %arg3: memref<16x32xf32, #tpu.memory_space<vmem>>, %arg4: memref<2x16xf32, #tpu.memory_space<vmem>>, %arg5: memref<32x128xbf16, #tpu.memory_space<vmem>>, %arg6: memref<16x128xf32, #tpu.memory_space<vmem>>, %arg7: memref<1x2x32xf32, #tpu.memory_space<vmem>>) attributes {dimension_semantics = [#tpu.dimension_semantics<parallel>], iteration_bounds = array<i64: 1>, scalar_prefetch = 0 : i64, scratch_operands = 0 : i64, tpu.core_type = #tpu.core_type<tc>, window_params = [{transform_indices = @transform_0, window_bounds = array<i64: 2>}, {transform_indices = @transform_1, window_bounds = array<i64: 16, 32>}, {transform_indices = @transform_2, window_bounds = array<i64: 16, 32>}, {pipeline_mode = #tpu.pipeline_mode<synchronous>, transform_indices = @transform_3, window_bounds = array<i64: 2, 16>}, {pipeline_mode = #tpu.pipeline_mode<synchronous>, transform_indices = @transform_4, window_bounds = array<i64: 32, 128>}, {transform_indices = @transform_5, window_bounds = array<i64: 16, 128>}, {transform_indices = @transform_6, window_bounds = array<i64: 1, 2, 32>}]} {
    %c0 = arith.constant 0 : index
    %c0_0 = arith.constant 0 : index
    %0 = vector.load %arg2[%c0, %c0_0] : memref<16x32xf32, #tpu.memory_space<vmem>>, vector<16x32xf32>
    %c0_1 = arith.constant 0 : index
    %c0_2 = arith.constant 0 : index
    %1 = vector.load %arg3[%c0_1, %c0_2] : memref<16x32xf32, #tpu.memory_space<vmem>>, vector<16x32xf32>
    %c0_3 = arith.constant 0 : index
    %2 = memref.load %arg1[%c0_3] : memref<2xf32, #tpu.memory_space<smem>>
    %3 = vector.broadcast %2 : f32 to vector<16x32xf32>
    %4 = arith.mulf %3, %0 : vector<16x32xf32>
    %c1 = arith.constant 1 : index
    %5 = memref.load %arg1[%c1] : memref<2xf32, #tpu.memory_space<smem>>
    %6 = vector.broadcast %5 : f32 to vector<16x32xf32>
    %7 = arith.mulf %6, %1 : vector<16x32xf32>
    %8 = arith.addf %4, %7 : vector<16x32xf32>
    %9 = arith.truncf %8 : vector<16x32xf32> to vector<16x32xbf16>
    %c0_4 = arith.constant 0 : index
    %c0_5 = arith.constant 0 : index
    %10 = vector.load %arg5[%c0_4, %c0_5] : memref<32x128xbf16, #tpu.memory_space<vmem>>, vector<32x128xbf16>
    %cst = arith.constant dense<0.000000e+00> : vector<16x128xf32>
    %11 = tpu.matmul %9, %10, %cst {dimension_numbers = #tpu.dot_dimension_numbers<[1], [0], [0], [1], [0, 0, 1, 1], [], []>} : vector<16x32xbf16>, vector<32x128xbf16>, vector<16x128xf32> -> vector<16x128xf32>
    %c0_6 = arith.constant 0 : index
    %c0_7 = arith.constant 0 : index
    %12 = vector.load %arg6[%c0_6, %c0_7] : memref<16x128xf32, #tpu.memory_space<vmem>>, vector<16x128xf32>
    tpu.vector_store %arg6[%c0_6, %c0_7], %11 {strides = array<i32>} : memref<16x128xf32, #tpu.memory_space<vmem>>, vector<16x128xf32>,
    %c0_8 = arith.constant 0 : index
    %c0_9 = arith.constant 0 : index
    %13 = vector.load %arg4[%c0_8, %c0_9] : memref<2x16xf32, #tpu.memory_space<vmem>>, vector<2x16xf32>
    %cst_10 = arith.constant dense<0.000000e+00> : vector<2x32xf32>
    %14 = tpu.matmul %13, %0, %cst_10 {dimension_numbers = #tpu.dot_dimension_numbers<[1], [0], [0], [1], [0, 0, 1, 1], [], []>} : vector<2x16xf32>, vector<16x32xf32>, vector<2x32xf32> -> vector<2x32xf32>
    %c0_11 = arith.constant 0 : index
    %c0_12 = arith.constant 0 : index
    %c0_13 = arith.constant 0 : index
    %15 = vector.load %arg7[%c0_11, %c0_12, %c0_13] : memref<1x2x32xf32, #tpu.memory_space<vmem>>, vector<1x2x32xf32>
    %16 = vector.shape_cast %15 : vector<1x2x32xf32> to vector<2x32xf32>
    %17 = vector.shape_cast %14 : vector<2x32xf32> to vector<1x2x32xf32>
    tpu.vector_store %arg7[%c0_11, %c0_12, %c0_13], %17 {strides = array<i32>} : memref<1x2x32xf32, #tpu.memory_space<vmem>>, vector<1x2x32xf32>,
    return
  }
  func.func @transform_0(%arg0: i32) -> i32 {
    %c0_i32 = arith.constant 0 : i32
    %c0_i32_0 = arith.constant 0 : i32
    return %c0_i32 : i32
  }
  func.func @transform_1(%arg0: i32) -> (i32, i32) {
    %c0_i32 = arith.constant 0 : i32
    %c0_i32_0 = arith.constant 0 : i32
    return %arg0, %c0_i32 : i32, i32
  }
  func.func @transform_2(%arg0: i32) -> (i32, i32) {
    %c0_i32 = arith.constant 0 : i32
    %c0_i32_0 = arith.constant 0 : i32
    return %arg0, %c0_i32 : i32, i32
  }
  func.func @transform_3(%arg0: i32) -> (i32, i32) {
    %c0_i32 = arith.constant 0 : i32
    %c0_i32_0 = arith.constant 0 : i32
    %c0_i32_1 = arith.constant 0 : i32
    return %c0_i32, %c0_i32_0 : i32, i32
  }
  func.func @transform_4(%arg0: i32) -> (i32, i32) {
    %c0_i32 = arith.constant 0 : i32
    %c0_i32_0 = arith.constant 0 : i32
    %c0_i32_1 = arith.constant 0 : i32
    return %c0_i32, %c0_i32_0 : i32, i32
  }
  func.func @transform_5(%arg0: i32) -> (i32, i32) {
    %c0_i32 = arith.constant 0 : i32
    %c0_i32_0 = arith.constant 0 : i32
    return %arg0, %c0_i32 : i32, i32
  }
  func.func @transform_6(%arg0: i32) -> (i32, i32, i32) {
    %c0_i32 = arith.constant 0 : i32
    %c0_i32_0 = arith.constant 0 : i32
    %c0_i32_1 = arith.constant 0 : i32
    return %arg0, %c0_i32, %c0_i32_0 : i32, i32, i32
  }
}

</mosaic_0001>

<llo_original>
// kernel: tpu_custom_call.1
$region0: #{tpu_custom_call.1}
  #allocation0 [shape = 'u32[]', space=smem, size = 0x4, offset = 0x4, fixed_abs, tag = 'smem constant byte address 0x4 - core index']
  #allocation1 [shape = 'u32[144,128]{1,0:T(1,128)}', space=vmem, size = 0x12000, scoped, tag = 'internal scratch']
  %s0 = inlined_call_operand.hbm [shape: f32[2], index: 0, kind: input, shape index: {}]
  %s1 = inlined_call_operand.hbm [shape: f32[16,32], index: 1, kind: input, shape index: {}]
  %s2 = inlined_call_operand.hbm [shape: f32[16,32], index: 2, kind: input, shape index: {}]
  %s3 = inlined_call_operand.vmem [shape: f32[2,16], index: 3, kind: input, shape index: {}]
  %s4 = inlined_call_operand.hbm [shape: bf16[32,128], index: 4, kind: input, shape index: {}]
  %s5 = inlined_call_operand.hbm [shape: f32[16,128], index: 5, kind: output, shape index: {0}]
  %s6 = inlined_call_operand.hbm [shape: f32[1,2,32], index: 6, kind: output, shape index: {1}]
  %7 = xla_tuple %s5, %s6
  %s8 = sld [smem:[#allocation0]]
  $region54: #{tpu_custom_call.1} parent=0
    _
  %s10 = ssub.s32 1, %s8
  %s11 = scalar_select 0, %s10, %s8
  $region1: #{tpu_custom_call.1} parent=0
    #allocation2 [shape = 'u8[512]{0}', space=smem, size = 0x200, scoped, tag = 'input window, operand 0, single buffered']
    #allocation3 [shape = 's32[1]{0}', space=sflag, size = 0x4, scoped, tag = 'scoped memory for tpu_custom_call.1']
    #allocation4 [shape = 's32[1]{0}', space=sflag, size = 0x4, scoped, tag = 'scoped memory for tpu_custom_call.1']
    #allocation5 [shape = 's32[1]{0}', space=sflag, size = 0x4, scoped, tag = 'scoped memory for tpu_custom_call.1']
    #allocation6 [shape = 'u8[8192]{0}', space=vmem, size = 0x2000, scoped, tag = 'input window, operand 1, single buffered']
    #allocation7 [shape = 'u8[8192]{0}', space=vmem, size = 0x2000, scoped, tag = 'input window, operand 2, single buffered']
    #allocation8 [shape = 's32[1]{0}', space=sflag, size = 0x4, scoped, tag = 'scoped memory for tpu_custom_call.1']
    #allocation9 [shape = 'u8[8192]{0}', space=vmem, size = 0x2000, scoped, tag = 'input window, operand 4, single buffered']
    #allocation10 [shape = 'u8[8192]{0}', space=vmem, size = 0x2000, scoped, tag = 'output window, operand 0, single buffered']
    #allocation11 [shape = 'u8[1024]{0}', space=vmem, size = 0x400, scoped, tag = 'output window, operand 1, single buffered']
    #allocation12 [shape = 's32[1]{0}', space=sflag, size = 0x4, scoped, tag = 'scoped memory for tpu_custom_call.1']
    %12 = vsyncpa [#allocation5], 0
    %13 = vsyncpa [#allocation3], 0
    %14 = vsyncpa [#allocation8], 0
    %15 = vsyncpa [#allocation4], 0
    %16 = vsyncpa [#allocation12], 0
    // Predicated region
    $region2: #{tpu_custom_call.1} parent=1 // pred_check
      _
    $region3: #{tpu_custom_call.1} parent=1 // pred_check_branch
      %18 = sbr.rel (0) target = $region5
    $region4: #{tpu_custom_call.1} parent=1 // pred_region
      %s20 = ssub.s32 16, 16
      %21 = vsyncadd [#allocation5], %s20
      %24 = dma.hbm_to_smem %s0, 16, [#allocation2], [#allocation5]
    $region5: #{tpu_custom_call.1} parent=1 // pred_fallthru
      _
    // Predicated region
    $region6: #{tpu_custom_call.1} parent=1 // pred_check
      _
    $region7: #{tpu_custom_call.1} parent=1 // pred_check_branch
      %26 = sbr.rel (0) target = $region9
    $region8: #{tpu_custom_call.1} parent=1 // pred_region
      %s28 = ssub.s32 256, 256
      %29 = vsyncadd [#allocation3], %s28
      %s30 = sshll.u32 [#allocation6], 4
      %s31 = int_to_ptr.vmem [resolvable:$true] %s30
      %36 = dma.hbm_to_vmem [thread:$0]  %s1, 256, %s31, [#allocation3], 128, 128, 8
    $region9: #{tpu_custom_call.1} parent=1 // pred_fallthru
      _
    // Predicated region
    $region10: #{tpu_custom_call.1} parent=1 // pred_check
      _
    $region11: #{tpu_custom_call.1} parent=1 // pred_check_branch
      %38 = sbr.rel (0) target = $region13
    $region12: #{tpu_custom_call.1} parent=1 // pred_region
      %s40 = ssub.s32 256, 256
      %41 = vsyncadd [#allocation8], %s40
      %s42 = sshll.u32 [#allocation7], 4
      %s43 = int_to_ptr.vmem [resolvable:$true] %s42
      %48 = dma.hbm_to_vmem [thread:$0]  %s2, 256, %s43, [#allocation8], 128, 128, 8
    $region13: #{tpu_custom_call.1} parent=1 // pred_fallthru
      _
    // Predicated region
    $region14: #{tpu_custom_call.1} parent=1 // pred_check
      _
    $region15: #{tpu_custom_call.1} parent=1 // pred_check_branch
      %50 = sbr.rel (0) target = $region17
    $region16: #{tpu_custom_call.1} parent=1 // pred_region
      _
    $region17: #{tpu_custom_call.1} parent=1 // pred_fallthru
      _
    // Predicated region
    $region18: #{tpu_custom_call.1} parent=1 // pred_check
      _
    $region19: #{tpu_custom_call.1} parent=1 // pred_check_branch
      %52 = sbr.rel (0) target = $region21
    $region20: #{tpu_custom_call.1} parent=1 // pred_region
      %s54 = ssub.s32 256, 256
      %55 = vsyncadd [#allocation8], %s54
      %s56 = sshll.u32 [#allocation9], 4
      %s57 = int_to_ptr.vmem [resolvable:$true] %s56
      %62 = dma.hbm_to_vmem [thread:$0]  %s4, 256, %s57, [#allocation8], 64, 64, 4
    $region21: #{tpu_custom_call.1} parent=1 // pred_fallthru
      _
    // Predicated region
    $region22: #{tpu_custom_call.1} parent=1 // pred_check
      _
    $region23: #{tpu_custom_call.1} parent=1 // pred_check_branch
      %64 = sbr.rel (0) target = $region25
    $region24: #{tpu_custom_call.1} parent=1 // pred_region
      %65 = dma.done [#allocation5], 16
    $region25: #{tpu_custom_call.1} parent=1 // pred_fallthru
      _
    // Predicated region
    $region26: #{tpu_custom_call.1} parent=1 // pred_check
      _
    $region27: #{tpu_custom_call.1} parent=1 // pred_check_branch
      %67 = sbr.rel (0) target = $region29
    $region28: #{tpu_custom_call.1} parent=1 // pred_region
      %68 = dma.done [#allocation3], 256
    $region29: #{tpu_custom_call.1} parent=1 // pred_fallthru
      _
    // Predicated region
    $region30: #{tpu_custom_call.1} parent=1 // pred_check
      _
    $region31: #{tpu_custom_call.1} parent=1 // pred_check_branch
      %70 = sbr.rel (0) target = $region33
    $region32: #{tpu_custom_call.1} parent=1 // pred_region
      %71 = dma.done [#allocation8], 256
    $region33: #{tpu_custom_call.1} parent=1 // pred_fallthru
      _
    // Predicated region
    $region34: #{tpu_custom_call.1} parent=1 // pred_check
      _
    $region35: #{tpu_custom_call.1} parent=1 // pred_check_branch
      %73 = sbr.rel (0) target = $region37
    $region36: #{tpu_custom_call.1} parent=1 // pred_region
      %74 = dma.done [#allocation8], 256
    $region37: #{tpu_custom_call.1} parent=1 // pred_fallthru
      _
    %75 = sfence
    %v77 = vld [vmem:[#allocation6] sm:$0xff]
    %v78 = vld [vmem:[#allocation6 + $0x8] sm:$0xff]
    %v79 = vld [vmem:[#allocation7] sm:$0xff]
    %v80 = vld [vmem:[#allocation7 + $0x8] sm:$0xff]
    %s81 = sld [smem:[#allocation2]]
    %v82 = vstv %s81
    %v83 = vmul.f32 %v82, %v77
    %v84 = vmul.f32 %v82, %v78
    %s85 = sld [smem:[#allocation2 + $0x1]]
    %v86 = vstv %s85
    %v87 = vmul.f32 %v86, %v79
    %v88 = vmul.f32 %v86, %v80
    %v89 = vadd.f32 %v83, %v87
    %v90 = vadd.f32 %v84, %v88
    %v91 = vpack.c.bf16 %v90, %v89
    %v92 = vld [vmem:[#allocation9] sm:$0xf]
    %v93 = vld [vmem:[#allocation9 + $0x4] sm:$0xf]
    %v94 = vld [vmem:[#allocation9 + $0x8] sm:$0xf]
    %v95 = vld [vmem:[#allocation9 + $0xc] sm:$0xf]
    %v100 = vunpack.c.l.b16 %v92
    %v101 = vunpack.c.l.b16 %v93
    %v102 = vunpack.c.l.b16 %v94
    %v103 = vunpack.c.l.b16 %v95
    %v104 = vpack.c.b16 %v101, %v100
    %v105 = vpack.c.b16 %v103, %v102
    %vm108 = vcmask 261120
    %v110 = vsel %vm108, %v91, 0
    %112 = vmatprep.subr.bf16.mxu0 0
    %113 = vmatpush1.bf16.msra.mxu0 %v104
    %114 = vmatprep.subr.bf16.mxu0 0
    %115 = vmatpush1.bf16.msra.mxu0 %v105
    %116 = vmatprep.subr.bf16.mxu0 0
    %117 = vmatpush1.bf16.msra.mxu0 0
    %118 = vmatprep.subr.bf16.mxu0 0
    %119 = vmatpush1.bf16.msra.mxu0 0
    %120 = vmatprep.subr.bf16.mxu0 0
    %121 = vmatpush1.bf16.msra.mxu0 0
    %122 = vmatprep.subr.bf16.mxu0 0
    %123 = vmatpush1.bf16.msra.mxu0 0
    %124 = vmatprep.subr.bf16.mxu0 0
    %125 = vmatpush1.bf16.msra.mxu0 0
    %126 = vmatprep.subr.bf16.mxu0 0
    %127 = vmatpush1.bf16.msra.mxu0 0
    %128 = vmatprep.subr.bf16.mxu0 0
    %129 = vmatpush1.bf16.msra.mxu0 0
    %130 = vmatprep.subr.bf16.mxu0 0
    %131 = vmatpush1.bf16.msra.mxu0 0
    %132 = vmatprep.subr.bf16.mxu0 0
    %133 = vmatpush1.bf16.msra.mxu0 0
    %134 = vmatprep.subr.bf16.mxu0 0
    %135 = vmatpush1.bf16.msra.mxu0 0
    %136 = vmatprep.subr.bf16.mxu0 0
    %137 = vmatpush1.bf16.msra.mxu0 0
    %138 = vmatprep.subr.bf16.mxu0 0
    %139 = vmatpush1.bf16.msra.mxu0 0
    %140 = vmatprep.subr.bf16.mxu0 0
    %141 = vmatpush1.bf16.msra.mxu0 0
    %142 = vmatprep.subr.bf16.mxu0 0
    %143 = vmatpush1.bf16.msra.mxu0 0
    %144 = vmatprep.mubr.bf16.mxu0 0
    %145 = vmatmul.mubr.bf16.gmra.mrb[0].mxu0 %v110
    %v146 = vpop.f32.mrb[0].mxu0
    %v147 = vadd.f32 0.0, %v146
    %v148 = vpop.f32.mrb[0].mxu0
    %v149 = vpop.f32.mrb[0].mxu0
    %v150 = vadd.f32 0.0, %v149
    %v151 = vpop.f32.mrb[0].mxu0
    %152 = vdwg.mxu0
    %153 = vst [vmem:[#allocation10] sm:$0xff] %v147
    %154 = vst [vmem:[#allocation10 + $0x8] sm:$0xff] %v150
    %v155 = vld [vmem:[%s3] sm:$0x3]
    %vm156 = vcmask 130048
    %v158 = vsel %vm156, %v155, 0
    %160 = vmatprep.subr.mxu0 0.0
    %161 = vmatpush1.msra.mxu0 %v77
    %162 = vmatprep.subr.mxu0 0.0
    %163 = vmatpush1.msra.mxu0 %v78
    %164 = vmatprep.subr.mxu0 0.0
    %165 = vmatpush1.msra.mxu0 0.0
    %166 = vmatprep.subr.mxu0 0.0
    %167 = vmatpush1.msra.mxu0 0.0
    %168 = vmatprep.subr.mxu0 0.0
    %169 = vmatpush1.msra.mxu0 0.0
    %170 = vmatprep.subr.mxu0 0.0
    %171 = vmatpush1.msra.mxu0 0.0
    %172 = vmatprep.subr.mxu0 0.0
    %173 = vmatpush1.msra.mxu0 0.0
    %174 = vmatprep.subr.mxu0 0.0
    %175 = vmatpush1.msra.mxu0 0.0
    %176 = vmatprep.subr.mxu0 0.0
    %177 = vmatpush1.msra.mxu0 0.0
    %178 = vmatprep.subr.mxu0 0.0
    %179 = vmatpush1.msra.mxu0 0.0
    %180 = vmatprep.subr.mxu0 0.0
    %181 = vmatpush1.msra.mxu0 0.0
    %182 = vmatprep.subr.mxu0 0.0
    %183 = vmatpush1.msra.mxu0 0.0
    %184 = vmatprep.subr.mxu0 0.0
    %185 = vmatpush1.msra.mxu0 0.0
    %186 = vmatprep.subr.mxu0 0.0
    %187 = vmatpush1.msra.mxu0 0.0
    %188 = vmatprep.subr.mxu0 0.0
    %189 = vmatpush1.msra.mxu0 0.0
    %190 = vmatprep.subr.mxu0 0.0
    %191 = vmatpush1.msra.mxu0 0.0
    %192 = vmatprep.subr.mxu0 0.0
    %193 = vmatpush1.msra.mxu0 0.0
    %194 = vmatprep.subr.mxu0 0.0
    %195 = vmatpush1.msra.mxu0 0.0
    %196 = vmatprep.subr.mxu0 0.0
    %197 = vmatpush1.msra.mxu0 0.0
    %198 = vmatprep.subr.mxu0 0.0
    %199 = vmatpush1.msra.mxu0 0.0
    %200 = vmatprep.subr.mxu0 0.0
    %201 = vmatpush1.msra.mxu0 0.0
    %202 = vmatprep.subr.mxu0 0.0
    %203 = vmatpush1.msra.mxu0 0.0
    %204 = vmatprep.subr.mxu0 0.0
    %205 = vmatpush1.msra.mxu0 0.0
    %206 = vmatprep.subr.mxu0 0.0
    %207 = vmatpush1.msra.mxu0 0.0
    %208 = vmatprep.subr.mxu0 0.0
    %209 = vmatpush1.msra.mxu0 0.0
    %210 = vmatprep.subr.mxu0 0.0
    %211 = vmatpush1.msra.mxu0 0.0
    %212 = vmatprep.subr.mxu0 0.0
    %213 = vmatpush1.msra.mxu0 0.0
    %214 = vmatprep.subr.mxu0 0.0
    %215 = vmatpush1.msra.mxu0 0.0
    %216 = vmatprep.subr.mxu0 0.0
    %217 = vmatpush1.msra.mxu0 0.0
    %218 = vmatprep.subr.mxu0 0.0
    %219 = vmatpush1.msra.mxu0 0.0
    %220 = vmatprep.subr.mxu0 0.0
    %221 = vmatpush1.msra.mxu0 0.0
    %222 = vmatprep.subr.mxu0 0.0
    %223 = vmatpush1.msra.mxu0 0.0
    %224 = vmatprep.mubr.f32.mxu0 0.0
    %225 = vmatmul.mubr.f32.gmra.mrb[0].mxu0 %v158
    %v226 = vpop.f32.mrb[0].mxu0
    %v227 = vadd.f32 0.0, %v226
    %v228 = vpop.f32.mrb[0].mxu0
    %229 = vdwg.mxu0
    %vm230 = vcmask 254976
    %231 = vst.msk [vmem:[#allocation11] sm:$0x3] %vm230, %v227
    // Predicated region
    $region38: #{tpu_custom_call.1} parent=1 // pred_check
      _
    $region39: #{tpu_custom_call.1} parent=1 // pred_check_branch
      %233 = sbr.rel (0) target = $region41
    $region40: #{tpu_custom_call.1} parent=1 // pred_region
      %s235 = ssub.s32 256, 256
      %236 = vsyncadd [#allocation4], %s235
      %s237 = sshll.u32 [#allocation10], 4
      %s238 = int_to_ptr.vmem [resolvable:$true] %s237
      %243 = dma.vmem_to_hbm [thread:$0]  %s238, 256, %s5, [#allocation4], 128, 128, 8
    $region41: #{tpu_custom_call.1} parent=1 // pred_fallthru
      _
    // Predicated region
    $region42: #{tpu_custom_call.1} parent=1 // pred_check
      _
    $region43: #{tpu_custom_call.1} parent=1 // pred_check_branch
      %245 = sbr.rel (0) target = $region45
    $region44: #{tpu_custom_call.1} parent=1 // pred_region
      %s247 = ssub.s32 32, 32
      %248 = vsyncadd [#allocation12], %s247
      %s250 = sshll.u32 [#allocation11], 4
      %s251 = int_to_ptr.vmem [resolvable:$true] %s250
      %253 = dma.vmem_to_hbm [thread:$0]  %s251, 32, %s6, [#allocation12]
    $region45: #{tpu_custom_call.1} parent=1 // pred_fallthru
      _
    // Predicated region
    $region46: #{tpu_custom_call.1} parent=1 // pred_check
      _
    $region47: #{tpu_custom_call.1} parent=1 // pred_check_branch
      %255 = sbr.rel (0) target = $region49
    $region48: #{tpu_custom_call.1} parent=1 // pred_region
      %256 = dma.done [#allocation4], 256
    $region49: #{tpu_custom_call.1} parent=1 // pred_fallthru
      _
    // Predicated region
    $region50: #{tpu_custom_call.1} parent=1 // pred_check
      _
    $region51: #{tpu_custom_call.1} parent=1 // pred_check_branch
      %258 = sbr.rel (0) target = $region53
    $region52: #{tpu_custom_call.1} parent=1 // pred_region
      %259 = dma.done [#allocation12], 32
    $region53: #{tpu_custom_call.1} parent=1 // pred_fallthru
      _
    %260 = vsyncpa [#allocation3], 1
    %261 = vsyncpa [#allocation8], 1
    %262 = vsyncpa [#allocation4], 1
    %263 = vsyncpa [#allocation12], 1
    %264 = vsyncpa [#allocation5], 1

</llo_original>
